<compile_context>
chip_gen: v6e
topology: v6e:2x2x1
jax: 0.10.0
libtpu: 0.0.40
codegen_flags: <defaults>
</compile_context>

<pallas_src>
import functools

import jax
import jax.numpy as jnp
from jax.experimental import pallas as pl
from jax.experimental.pallas import tpu as pltpu


# -----------------------------------------------------------------------------
# Pallas kernel: one (batch, query-tile) pair per grid step.  Keys/values are
# computed once per batch (q == 0) into VMEM scratch and reused across q tiles.
# -----------------------------------------------------------------------------
def _self_attn_kernel(x_ref, xg_ref, wq_ref, wkv_ref, wo_ref, out_ref,
                      phi_sc, v_sc, *, C8p, Lp, fuse_wo):
    f32, bf16 = jnp.float32, jnp.bfloat16

    # ---- key/value path: hoisted, runs only for the first query tile --------
    @pl.when(pl.program_id(1) == 0)
    def _():
        wkv = wkv_ref[...]                                           # [C8p+C2p, C] bf16
        # Fused phi/g projection, chunked over the 4 pool-window positions and
        # max-accumulated (== 2x2 maxpool of the 1x1-conv output, which is
        # pointwise so projection and pooling commute).  Never builds the
        # [Cout, 4*Lp] f32 intermediate.
        pooled = jnp.dot(wkv, xg_ref[0, 0], preferred_element_type=f32)
        for k in range(1, 4):
            pooled = jnp.maximum(
                pooled, jnp.dot(wkv, xg_ref[0, k], preferred_element_type=f32))
        phi_sc[...] = pooled[:C8p].astype(bf16)                      # [C8p, Lp]
        g = pooled[C8p:].astype(bf16)                                # [C2p, Lp]
        if fuse_wo:
            # Lp < C: reassociate o = wo @ (g @ e) = (wo @ g) @ e and hoist
            # wo @ g (gamma already folded into wo).
            v_sc[...] = jnp.dot(wo_ref[...], g,
                                preferred_element_type=f32).astype(bf16)  # [C, Lp]
        else:
            v_sc[...] = g                                            # [C2p, Lp]

    # ---- per-query-tile attention -------------------------------------------
    x_tile = x_ref[0]                                                # [C, tl] f32
    theta = jnp.dot(wq_ref[...], x_tile.astype(bf16),
                    preferred_element_type=f32).astype(bf16)         # [C8p, tl]

    # Logits keys-major so the softmax statistics are [1, tl] row vectors.
    lg = jax.lax.dot_general(phi_sc[...], theta, (((0,), (0,)), ((), ())),
                             preferred_element_type=f32)             # [Lp, tl]
    m = jnp.max(lg, axis=0, keepdims=True)                           # [1, tl]
    e = jnp.exp(lg - m)                                              # [Lp, tl] f32
    s = jnp.sum(e, axis=0, keepdims=True)                            # [1, tl]
    eb = e.astype(bf16)

    if fuse_wo:
        o = jnp.dot(v_sc[...], eb, preferred_element_type=f32)       # [C, tl]
    else:
        ag = jnp.dot(v_sc[...], eb, preferred_element_type=f32)      # [C2p, tl]
        o = jnp.dot(wo_ref[...], ag.astype(bf16),
                    preferred_element_type=f32)                      # [C, tl]

    # Deferred softmax normalization (gamma already folded into wo).
    out_ref[0] = x_tile + o * pl.reciprocal(s, approx=True)


def self_attn_pallas(x, wt, wp, wg, wo, gamma, *, q_tile=None,
                     vmem_limit_bytes=None):
    """SAGAN self-attention forward.

    x: [B, C, H, W] f32; wt:[C/8,C], wp:[C/8,C], wg:[C/2,C], wo:[C,C/2]
    (spectrally normalized 1x1-conv weights); gamma: shape (1,).
    """
    B, C, H, W = x.shape
    assert C % 8 == 0 and H % 2 == 0 and W % 2 == 0
    L = H * W
    Lp = L // 4
    C8, C2 = C // 8, C // 2
    C8p = ((C8 + 15) // 16) * 16          # pad head dims to bf16 packed-sublane (16)
    C2p = ((C2 + 15) // 16) * 16
    fuse_wo = Lp < C                      # hoist wo@g when the attended length is small

    if q_tile is None:
        # TODO(synk): drop to 256 on v7x (64 MiB physical VMEM) at BigGAN scale.
        q_tile = L if L <= 512 else 512
    assert L % q_tile == 0 and (q_tile == L or q_tile % 128 == 0)
    nq = L // q_tile

    bf16 = jnp.bfloat16

    # queries + residual: plain f32 reshape view, original row-major (h, w) order
    x_flat = x.reshape(B, C, L)
    # keys/values: pool-position-major grouped layout [B, k=2*dh+dw, C, Lp]
    x_grp = (x.astype(bf16)
               .reshape(B, C, H // 2, 2, W // 2, 2)
               .transpose(0, 3, 5, 1, 2, 4)
               .reshape(B, 4, C, Lp))

    gamma_s = jnp.reshape(gamma, ()).astype(jnp.float32)
    # fused + zero-padded weights (pad rows/cols contribute exact zeros end-to-end)
    wq_pad = jnp.zeros((C8p, C), jnp.float32).at[:C8].set(wt).astype(bf16)
    wkv_pad = (jnp.zeros((C8p + C2p, C), jnp.float32)
               .at[:C8].set(wp)
               .at[C8p:C8p + C2].set(wg)
               .astype(bf16))
    # gamma only multiplies o (not the residual) -> fold it into wo at trace time.
    wo_pad = (jnp.zeros((C, C2p), jnp.float32).at[:, :C2].set(wo)
              * gamma_s).astype(bf16)

    kernel = functools.partial(_self_attn_kernel, C8p=C8p, Lp=Lp, fuse_wo=fuse_wo)
    v_rows = C if fuse_wo else C2p

    out = pl.pallas_call(
        kernel,
        out_shape=jax.ShapeDtypeStruct((B, C, L), jnp.float32),
        grid_spec=pltpu.PrefetchScalarGridSpec(
            num_scalar_prefetch=0,
            grid=(B, nq),
            in_specs=[
                pl.BlockSpec((1, C, q_tile), lambda b, q: (b, 0, q)),     # x (queries)
                pl.BlockSpec((1, 4, C, Lp), lambda b, q: (b, 0, 0, 0)),   # x grouped (keys)
                pl.BlockSpec((C8p, C), lambda b, q: (0, 0)),              # wq
                pl.BlockSpec((C8p + C2p, C), lambda b, q: (0, 0)),        # wkv
                pl.BlockSpec((C, C2p), lambda b, q: (0, 0)),              # wo (gamma folded)
            ],
            out_specs=pl.BlockSpec((1, C, q_tile), lambda b, q: (b, 0, q)),
            scratch_shapes=[
                pltpu.VMEM((C8p, Lp), bf16),      # pooled phi
                pltpu.VMEM((v_rows, Lp), bf16),   # pooled g, or hoisted wo@g
            ],
        ),
        compiler_params=pltpu.CompilerParams(
            dimension_semantics=("parallel", "arbitrary"),
            vmem_limit_bytes=vmem_limit_bytes),
    )(x_flat, x_grp, wq_pad, wkv_pad, wo_pad)

    return out.reshape(B, C, H, W)


# -----------------------------------------------------------------------------
# Parameter setup: 1x1-conv weights + spectral norm (1 power iteration), matching
# nn.utils.spectral_norm semantics with a deterministic u vector.
# -----------------------------------------------------------------------------
def spectral_normalize(w4d, key, eps=1e-12, n_iter=1):
    out_ch = w4d.shape[0]
    w = w4d.reshape(out_ch, -1)
    u = jax.random.normal(key, (out_ch,), dtype=jnp.float32)
    u = u / jnp.maximum(jnp.linalg.norm(u), eps)
    v = None
    for _ in range(n_iter):
        v = w.T @ u
        v = v / jnp.maximum(jnp.linalg.norm(v), eps)
        u = w @ v
        u = u / jnp.maximum(jnp.linalg.norm(u), eps)
    sigma = u @ (w @ v)
    return (w / sigma).astype(jnp.float32)


# -----------------------------------------------------------------------------
# Pure-JAX f32 reference mirroring the PyTorch forward exactly.
# -----------------------------------------------------------------------------
def reference(x, wt, wp, wg, wo, gamma):
    B, C, H, W = x.shape
    L, Lp = H * W, (H * W) // 4
    pool = functools.partial(jax.lax.reduce_window, init_value=-jnp.inf,
                             computation=jax.lax.max,
                             window_dimensions=(1, 1, 2, 2),
                             window_strides=(1, 1, 2, 2), padding='VALID')
    xf = x.reshape(B, C, L)
    theta = jnp.einsum('oc,bcl->bol', wt, xf)
    phi = pool(jnp.einsum('oc,bchw->bohw', wp, x)).reshape(B, C // 8, Lp)
    attn = jax.nn.softmax(jnp.einsum('bcl,bcm->blm', theta, phi), axis=-1)
    g = pool(jnp.einsum('oc,bchw->bohw', wg, x)).reshape(B, C // 2, Lp)
    attn_g = jnp.einsum('bcm,blm->bcl', g, attn).reshape(B, C // 2, H, W)
    o = jnp.einsum('oc,bchw->bohw', wo, attn_g)
    return x + gamma * o


if __name__ == "__main__":
    def run_case(B, C, H, W, q_tile, key):
        kx, kt, kp, kg, ko, kut, kup, kug, kuo = jax.random.split(key, 9)
        x = jax.random.normal(kx, (B, C, H, W), dtype=jnp.float32)

        # 1x1-conv weights as in __init__: (out, in, 1, 1), no bias
        w_theta = jax.random.normal(kt, (C // 8, C, 1, 1), jnp.float32) * 0.1
        w_phi = jax.random.normal(kp, (C // 8, C, 1, 1), jnp.float32) * 0.1
        w_g = jax.random.normal(kg, (C // 2, C, 1, 1), jnp.float32) * 0.1
        w_o = jax.random.normal(ko, (C, C // 2, 1, 1), jnp.float32) * 0.1

        wt = spectral_normalize(w_theta, kut)        # [C/8, C]
        wp = spectral_normalize(w_phi, kup)          # [C/8, C]
        wg = spectral_normalize(w_g, kug)            # [C/2, C]
        wo = spectral_normalize(w_o, kuo)            # [C, C/2]

        # module inits gamma to 0 -> layer must be an exact f32 identity
        gamma0 = jnp.zeros((1,), jnp.float32)
        out0 = jax.block_until_ready(
            self_attn_pallas(x, wt, wp, wg, wo, gamma0, q_tile=q_tile))
        assert bool(jnp.array_equal(out0, x)), "gamma=0 identity not exact"

        # nonzero gamma so the attention path is verified
        gamma = jnp.array([0.5], dtype=jnp.float32)
        out = jax.block_until_ready(
            self_attn_pallas(x, wt, wp, wg, wo, gamma, q_tile=q_tile))
        ref = jax.block_until_ready(reference(x, wt, wp, wg, wo, gamma[0]))

        assert out.shape == (B, C, H, W)
        err = float(jnp.max(jnp.abs(out - ref)))
        # bf16 matmul inputs + approx reciprocal => looser tolerance than pure-f32.
        assert jnp.allclose(out, ref, rtol=5e-2, atol=5e-2), f"max err {err}"

    key = jax.random.PRNGKey(0)
    k1, k2 = jax.random.split(key)
    # case 1: Lp >= C  -> per-tile output-projection branch, nq=2 exercises the hoist
    run_case(2, 32, 16, 16, 128, k1)
    # case 2: Lp <  C  -> hoisted (wo @ g) reassociation branch, nq=2
    run_case(2, 256, 16, 16, 128, k2)
    print("KERNEL_OK")
</pallas_src>

<mosaic_0001>
module attributes {stable_mosaic.version = 11 : i64} {
  func.func @_self_attn_kernel(%arg0: i32, %arg1: i32, %arg2: memref<1x32x128xf32, #tpu.memory_space<vmem>>, %arg3: memref<1x4x32x64xbf16, #tpu.memory_space<vmem>>, %arg4: memref<16x32xbf16, #tpu.memory_space<vmem>>, %arg5: memref<32x32xbf16, #tpu.memory_space<vmem>>, %arg6: memref<32x16xbf16, #tpu.memory_space<vmem>>, %arg7: memref<1x32x128xf32, #tpu.memory_space<vmem>>, %arg8: memref<16x64xbf16, #tpu.memory_space<vmem>>, %arg9: memref<16x64xbf16, #tpu.memory_space<vmem>>) attributes {dimension_semantics = [#tpu.dimension_semantics<parallel>, #tpu.dimension_semantics<arbitrary>], iteration_bounds = array<i64: 2, 2>, scalar_prefetch = 0 : i64, scratch_operands = 2 : i64, tpu.core_type = #tpu.core_type<tc>, window_params = [{transform_indices = @transform_0, window_bounds = array<i64: 1, 32, 128>}, {transform_indices = @transform_1, window_bounds = array<i64: 1, 4, 32, 64>}, {pipeline_mode = #tpu.pipeline_mode<synchronous>, transform_indices = @transform_2, window_bounds = array<i64: 16, 32>}, {pipeline_mode = #tpu.pipeline_mode<synchronous>, transform_indices = @transform_3, window_bounds = array<i64: 32, 32>}, {pipeline_mode = #tpu.pipeline_mode<synchronous>, transform_indices = @transform_4, window_bounds = array<i64: 32, 16>}, {transform_indices = @transform_5, window_bounds = array<i64: 1, 32, 128>}]} {
    %c0_i32 = arith.constant 0 : i32
    %0 = arith.cmpi eq, %arg1, %c0_i32 : i32
    %1 = arith.extui %0 : i1 to i32
    %c0_i32_0 = arith.constant 0 : i32
    %2 = arith.cmpi ne, %1, %c0_i32_0 : i32
    scf.if %2 {
      %c0_19 = arith.constant 0 : index
      %c0_20 = arith.constant 0 : index
      %31 = vector.load %arg5[%c0_19, %c0_20] : memref<32x32xbf16, #tpu.memory_space<vmem>>, vector<32x32xbf16>
      %c0_21 = arith.constant 0 : index
      %c0_22 = arith.constant 0 : index
      %c0_23 = arith.constant 0 : index
      %c0_24 = arith.constant 0 : index
      %32 = vector.load %arg3[%c0_21, %c0_22, %c0_23, %c0_24] : memref<1x4x32x64xbf16, #tpu.memory_space<vmem>>, vector<1x1x32x64xbf16>
      %33 = vector.shape_cast %32 : vector<1x1x32x64xbf16> to vector<32x64xbf16>
      %cst_25 = arith.constant dense<0.000000e+00> : vector<32x64xf32>
      %34 = tpu.matmul %31, %33, %cst_25 {dimension_numbers = #tpu.dot_dimension_numbers<[1], [0], [0], [1], [0, 0, 1, 1], [], []>} : vector<32x32xbf16>, vector<32x64xbf16>, vector<32x64xf32> -> vector<32x64xf32>
      %c0_26 = arith.constant 0 : index
      %c1 = arith.constant 1 : index
      %c0_27 = arith.constant 0 : index
      %c0_28 = arith.constant 0 : index
      %35 = vector.load %arg3[%c0_26, %c1, %c0_27, %c0_28] : memref<1x4x32x64xbf16, #tpu.memory_space<vmem>>, vector<1x1x32x64xbf16>
      %36 = vector.shape_cast %35 : vector<1x1x32x64xbf16> to vector<32x64xbf16>
      %cst_29 = arith.constant dense<0.000000e+00> : vector<32x64xf32>
      %37 = tpu.matmul %31, %36, %cst_29 {dimension_numbers = #tpu.dot_dimension_numbers<[1], [0], [0], [1], [0, 0, 1, 1], [], []>} : vector<32x32xbf16>, vector<32x64xbf16>, vector<32x64xf32> -> vector<32x64xf32>
      %38 = arith.maximumf %34, %37 : vector<32x64xf32>
      %c0_30 = arith.constant 0 : index
      %c2 = arith.constant 2 : index
      %c0_31 = arith.constant 0 : index
      %c0_32 = arith.constant 0 : index
      %39 = vector.load %arg3[%c0_30, %c2, %c0_31, %c0_32] : memref<1x4x32x64xbf16, #tpu.memory_space<vmem>>, vector<1x1x32x64xbf16>
      %40 = vector.shape_cast %39 : vector<1x1x32x64xbf16> to vector<32x64xbf16>
      %cst_33 = arith.constant dense<0.000000e+00> : vector<32x64xf32>
      %41 = tpu.matmul %31, %40, %cst_33 {dimension_numbers = #tpu.dot_dimension_numbers<[1], [0], [0], [1], [0, 0, 1, 1], [], []>} : vector<32x32xbf16>, vector<32x64xbf16>, vector<32x64xf32> -> vector<32x64xf32>
      %42 = arith.maximumf %38, %41 : vector<32x64xf32>
      %c0_34 = arith.constant 0 : index
      %c3 = arith.constant 3 : index
      %c0_35 = arith.constant 0 : index
      %c0_36 = arith.constant 0 : index
      %43 = vector.load %arg3[%c0_34, %c3, %c0_35, %c0_36] : memref<1x4x32x64xbf16, #tpu.memory_space<vmem>>, vector<1x1x32x64xbf16>
      %44 = vector.shape_cast %43 : vector<1x1x32x64xbf16> to vector<32x64xbf16>
      %cst_37 = arith.constant dense<0.000000e+00> : vector<32x64xf32>
      %45 = tpu.matmul %31, %44, %cst_37 {dimension_numbers = #tpu.dot_dimension_numbers<[1], [0], [0], [1], [0, 0, 1, 1], [], []>} : vector<32x32xbf16>, vector<32x64xbf16>, vector<32x64xf32> -> vector<32x64xf32>
      %46 = arith.maximumf %42, %45 : vector<32x64xf32>
      %47 = vector.extract_strided_slice %46 {offsets = [0, 0], sizes = [16, 64], strides = [1, 1]} : vector<32x64xf32> to vector<16x64xf32>
      %48 = arith.truncf %47 : vector<16x64xf32> to vector<16x64xbf16>
      %c0_38 = arith.constant 0 : index
      %c0_39 = arith.constant 0 : index
      %49 = vector.load %arg8[%c0_38, %c0_39] : memref<16x64xbf16, #tpu.memory_space<vmem>>, vector<16x64xbf16>
      tpu.vector_store %arg8[%c0_38, %c0_39], %48 {strides = array<i32>} : memref<16x64xbf16, #tpu.memory_space<vmem>>, vector<16x64xbf16>,
      %50 = vector.extract_strided_slice %46 {offsets = [16, 0], sizes = [16, 64], strides = [1, 1]} : vector<32x64xf32> to vector<16x64xf32>
      %51 = arith.truncf %50 : vector<16x64xf32> to vector<16x64xbf16>
      %c0_40 = arith.constant 0 : index
      %c0_41 = arith.constant 0 : index
      %52 = vector.load %arg9[%c0_40, %c0_41] : memref<16x64xbf16, #tpu.memory_space<vmem>>, vector<16x64xbf16>
      tpu.vector_store %arg9[%c0_40, %c0_41], %51 {strides = array<i32>} : memref<16x64xbf16, #tpu.memory_space<vmem>>, vector<16x64xbf16>,
    } else {
    }
    %c0 = arith.constant 0 : index
    %c0_1 = arith.constant 0 : index
    %c0_2 = arith.constant 0 : index
    %3 = vector.load %arg2[%c0, %c0_1, %c0_2] : memref<1x32x128xf32, #tpu.memory_space<vmem>>, vector<1x32x128xf32>
    %4 = vector.shape_cast %3 : vector<1x32x128xf32> to vector<32x128xf32>
    %c0_3 = arith.constant 0 : index
    %c0_4 = arith.constant 0 : index
    %5 = vector.load %arg4[%c0_3, %c0_4] : memref<16x32xbf16, #tpu.memory_space<vmem>>, vector<16x32xbf16>
    %6 = arith.truncf %4 : vector<32x128xf32> to vector<32x128xbf16>
    %cst = arith.constant dense<0.000000e+00> : vector<16x128xf32>
    %7 = tpu.matmul %5, %6, %cst {dimension_numbers = #tpu.dot_dimension_numbers<[1], [0], [0], [1], [0, 0, 1, 1], [], []>} : vector<16x32xbf16>, vector<32x128xbf16>, vector<16x128xf32> -> vector<16x128xf32>
    %8 = arith.truncf %7 : vector<16x128xf32> to vector<16x128xbf16>
    %c0_5 = arith.constant 0 : index
    %c0_6 = arith.constant 0 : index
    %9 = vector.load %arg8[%c0_5, %c0_6] : memref<16x64xbf16, #tpu.memory_space<vmem>>, vector<16x64xbf16>
    %cst_7 = arith.constant dense<0.000000e+00> : vector<64x128xf32>
    %10 = tpu.matmul %9, %8, %cst_7 {dimension_numbers = #tpu.dot_dimension_numbers<[0], [0], [1], [1], [0, 1, 1, 1], [], []>} : vector<16x64xbf16>, vector<16x128xbf16>, vector<64x128xf32> -> vector<64x128xf32>
    %cst_8 = arith.constant dense<0xFF800000> : vector<128xf32>
    %11 = vector.multi_reduction <maximumf>, %10, %cst_8 [0] : vector<64x128xf32> to vector<128xf32>
    %12 = vector.shape_cast %11 : vector<128xf32> to vector<1x128xf32>
    %13 = vector.broadcast %12 : vector<1x128xf32> to vector<64x128xf32>
    %14 = arith.subf %10, %13 : vector<64x128xf32>
    %15 = math.exp %14 : vector<64x128xf32>
    %cst_9 = arith.constant dense<0.000000e+00> : vector<128xf32>
    %16 = vector.multi_reduction <add>, %15, %cst_9 [0] : vector<64x128xf32> to vector<128xf32>
    %17 = vector.shape_cast %16 : vector<128xf32> to vector<1x128xf32>
    %18 = arith.truncf %15 : vector<64x128xf32> to vector<64x128xbf16>
    %c0_10 = arith.constant 0 : index
    %c0_11 = arith.constant 0 : index
    %19 = vector.load %arg9[%c0_10, %c0_11] : memref<16x64xbf16, #tpu.memory_space<vmem>>, vector<16x64xbf16>
    %cst_12 = arith.constant dense<0.000000e+00> : vector<16x128xf32>
    %20 = tpu.matmul %19, %18, %cst_12 {dimension_numbers = #tpu.dot_dimension_numbers<[1], [0], [0], [1], [0, 0, 1, 1], [], []>} : vector<16x64xbf16>, vector<64x128xbf16>, vector<16x128xf32> -> vector<16x128xf32>
    %c0_13 = arith.constant 0 : index
    %c0_14 = arith.constant 0 : index
    %21 = vector.load %arg6[%c0_13, %c0_14] : memref<32x16xbf16, #tpu.memory_space<vmem>>, vector<32x16xbf16>
    %22 = arith.truncf %20 : vector<16x128xf32> to vector<16x128xbf16>
    %cst_15 = arith.constant dense<0.000000e+00> : vector<32x128xf32>
    %23 = tpu.matmul %21, %22, %cst_15 {dimension_numbers = #tpu.dot_dimension_numbers<[1], [0], [0], [1], [0, 0, 1, 1], [], []>} : vector<32x16xbf16>, vector<16x128xbf16>, vector<32x128xf32> -> vector<32x128xf32>
    %24 = tpu.reciprocal %17 {approx = true} : vector<1x128xf32> -> vector<1x128xf32>
    %25 = vector.broadcast %24 : vector<1x128xf32> to vector<32x128xf32>
    %26 = arith.mulf %23, %25 : vector<32x128xf32>
    %27 = arith.addf %4, %26 : vector<32x128xf32>
    %c0_16 = arith.constant 0 : index
    %c0_17 = arith.constant 0 : index
    %c0_18 = arith.constant 0 : index
    %28 = vector.load %arg7[%c0_16, %c0_17, %c0_18] : memref<1x32x128xf32, #tpu.memory_space<vmem>>, vector<1x32x128xf32>
    %29 = vector.shape_cast %28 : vector<1x32x128xf32> to vector<32x128xf32>
    %30 = vector.shape_cast %27 : vector<32x128xf32> to vector<1x32x128xf32>
    tpu.vector_store %arg7[%c0_16, %c0_17, %c0_18], %30 {strides = array<i32>} : memref<1x32x128xf32, #tpu.memory_space<vmem>>, vector<1x32x128xf32>,
    return
  }
  func.func @transform_0(%arg0: i32, %arg1: i32) -> (i32, i32, i32) {
    %c0_i32 = arith.constant 0 : i32
    %c0_i32_0 = arith.constant 0 : i32
    return %arg0, %c0_i32, %arg1 : i32, i32, i32
  }
  func.func @transform_1(%arg0: i32, %arg1: i32) -> (i32, i32, i32, i32) {
    %c0_i32 = arith.constant 0 : i32
    %c0_i32_0 = arith.constant 0 : i32
    %c0_i32_1 = arith.constant 0 : i32
    %c0_i32_2 = arith.constant 0 : i32
    return %arg0, %c0_i32, %c0_i32_0, %c0_i32_1 : i32, i32, i32, i32
  }
  func.func @transform_2(%arg0: i32, %arg1: i32) -> (i32, i32) {
    %c0_i32 = arith.constant 0 : i32
    %c0_i32_0 = arith.constant 0 : i32
    %c0_i32_1 = arith.constant 0 : i32
    return %c0_i32, %c0_i32_0 : i32, i32
  }
  func.func @transform_3(%arg0: i32, %arg1: i32) -> (i32, i32) {
    %c0_i32 = arith.constant 0 : i32
    %c0_i32_0 = arith.constant 0 : i32
    %c0_i32_1 = arith.constant 0 : i32
    return %c0_i32, %c0_i32_0 : i32, i32
  }
  func.func @transform_4(%arg0: i32, %arg1: i32) -> (i32, i32) {
    %c0_i32 = arith.constant 0 : i32
    %c0_i32_0 = arith.constant 0 : i32
    %c0_i32_1 = arith.constant 0 : i32
    return %c0_i32, %c0_i32_0 : i32, i32
  }
  func.func @transform_5(%arg0: i32, %arg1: i32) -> (i32, i32, i32) {
    %c0_i32 = arith.constant 0 : i32
    %c0_i32_0 = arith.constant 0 : i32
    return %arg0, %c0_i32, %arg1 : i32, i32, i32
  }
}

</mosaic_0001>

<llo_original>
// kernel: tpu_custom_call.1
$region0: #{tpu_custom_call.1}
  #allocation0 [shape = 'u32[]', space=smem, size = 0x4, offset = 0x4, fixed_abs, tag = 'smem constant byte address 0x4 - core index']
  #allocation1 [shape = 'u32[144,128]{1,0:T(1,128)}', space=vmem, size = 0x12000, scoped, tag = 'internal scratch']
  #allocation2 [shape = 'bf16[16,64]{1,0:T(8,128)(2,1)}', space=vmem, size = 0x1000, scoped, tag = 'scratch operand']
  #allocation3 [shape = 'bf16[16,64]{1,0:T(8,128)(2,1)}', space=vmem, size = 0x1000, scoped, tag = 'scratch operand']
  %s0 = inlined_call_operand.hbm [shape: f32[2,32,256], index: 0, kind: input, shape index: {}]
  %s1 = inlined_call_operand.hbm [shape: bf16[2,4,32,64], index: 1, kind: input, shape index: {}]
  %s2 = inlined_call_operand.vmem [shape: bf16[16,32], index: 2, kind: input, shape index: {}]
  %s3 = inlined_call_operand.vmem [shape: bf16[32,32], index: 3, kind: input, shape index: {}]
  %s4 = inlined_call_operand.vmem [shape: bf16[32,16], index: 4, kind: input, shape index: {}]
  %s5 = inlined_call_operand.hbm [shape: f32[2,32,256], index: 5, kind: output, shape index: {}]
  %s6 = sld [smem:[#allocation0]]
  $region65: #{tpu_custom_call.1} parent=0
    _
  %s8 = ssub.s32 1, %s6
  %s9 = scalar_select 0, %s8, %s6
  $region1: #{tpu_custom_call.1} parent=0
    #allocation4 [shape = 'u8[32768]{0}', space=vmem, size = 0x8000, scoped, tag = 'input window, operand 0']
    #allocation5 [shape = 's32[2]{0}', space=sflag, size = 0x8, scoped, tag = 'scoped memory for tpu_custom_call.1']
    #allocation6 [shape = 's32[2]{0}', space=sflag, size = 0x8, scoped, tag = 'scoped memory for tpu_custom_call.1']
    #allocation7 [shape = 'u8[65536]{0}', space=vmem, size = 0x10000, scoped, tag = 'input window, operand 1']
    #allocation8 [shape = 's32[2]{0}', space=sflag, size = 0x8, scoped, tag = 'scoped memory for tpu_custom_call.1']
    #allocation9 [shape = 'u8[32768]{0}', space=vmem, size = 0x8000, scoped, tag = 'output window, operand 0']
    %10 = vsyncpa [#allocation5], 0
    %s11 = scalar_lea.sflag [#allocation5], 1
    %12 = vsyncpa %s11, 0
    %13 = vsyncpa [#allocation8], 0
    %s14 = scalar_lea.sflag [#allocation8], 1
    %15 = vsyncpa %s14, 0
    %16 = vsyncpa [#allocation6], 0
    %s17 = scalar_lea.sflag [#allocation6], 1
    %18 = vsyncpa %s17, 0
    loop: start=0, step=1, limit=6
    $region2: #{tpu_custom_call.1} parent=1 // loop_pre_header
      _
    $region3: #{tpu_custom_call.1} parent=1 // loop_header
      %s20 = sphi 0, %s24
      %p21 = scmp.ge.s32.totalorder %s20, 6
      %s27 = sphi 0, %s39
      %s28 = sphi 0, %s35
      %s29 = sphi 0, %s27
      %s30 = sphi 0, %s28
      %s31 = sphi 0, %s29
      %s32 = sphi 0, %s30
      %s44 = sphi 0, %s46
      %s47 = sphi 0, %s44
      %s48 = sphi 0, %s47
      %s64 = sphi 0, %s48
      %s70 = sphi 0, %s72
      %s73 = sphi 0, %s70
      %s74 = sphi 0, %s73
      %s90 = sphi 0, %s74
      %s94 = sphi 0, %s94
      %s96 = sphi 0, %s94
      %s97 = sphi 0, %s96
      %s111 = sphi 0, %s97
      %s115 = sphi 0, %s115
      %s117 = sphi 0, %s115
      %s118 = sphi 0, %s117
      %s132 = sphi 0, %s118
      %s136 = sphi 0, %s136
      %s138 = sphi 0, %s136
      %s139 = sphi 0, %s138
      %s153 = sphi 0, %s139
      %s161 = sphi 0, %s163
      %s164 = sphi 0, %s161
      %s165 = sphi 0, %s164
      %s181 = sphi 0, %s165
    $region4: #{tpu_custom_call.1} parent=1 // loop_header_branch
      %23 = sbr.rel (%p21) target = $region8
    $region5: #{tpu_custom_call.1} parent=1 // loop_body
      %s25 = ssub.s32 %s20, 1
      %s26 = ssub.s32 %s20, 2
      %s33 = sadd.s32 1, %s28
      %p34 = scmp.ge.s32.totalorder %s33, 2
      %s35 = scalar_select %p34, 0, %s33
      %s36 = sadd.s32 1, %s27
      %s37 = scalar_select %p34, %s36, %s27
      %p38 = scmp.ge.s32.totalorder %s37, 2
      %s39 = scalar_select %p38, 0, %s37
      %s40 = ssub.s32 %s27, %s39
      %s41 = ssub.s32 %s28, %s35
      %s42 = sor.u32 %s40, %s41
      %p43 = scmp.eq.s32.totalorder %s42, 0
      %s45 = sadd.s32 %s44, 1
      %s46 = scalar_select %p43, %s44, %s45
      %p49 = pneg %p43
      %p50 = scmp.eq.s32.totalorder %s20, 3
      %p51 = por %p49, %p50
      %p52 = scmp.ne.s32.totalorder %s44, %s47
      %p53 = scmp.eq.s32.totalorder %s20, 0
      %p54 = por %p52, %p53
      %p55 = scmp.ne.s32.totalorder %s44, %s47
      %p56 = scmp.eq.s32.totalorder %s25, 3
      %p57 = por %p55, %p56
      %p58 = scmp.ne.s32.totalorder %s47, %s48
      %p59 = scmp.eq.s32.totalorder %s25, 0
      %p60 = por %p58, %p59
      %p61 = scmp.ne.s32.totalorder %s47, %s48
      %p62 = scmp.eq.s32.totalorder %s26, 3
      %p63 = por %p61, %p62
      %p65 = scmp.ne.s32.totalorder %s48, %s64
      %p66 = scmp.eq.s32.totalorder %s26, 0
      %p67 = por %p65, %p66
      %s68 = ssub.s32 %s27, %s39
      %p69 = scmp.eq.s32.totalorder %s68, 0
      %s71 = sadd.s32 %s70, 1
      %s72 = scalar_select %p69, %s70, %s71
      %p75 = pneg %p69
      %p76 = scmp.eq.s32.totalorder %s20, 3
      %p77 = por %p75, %p76
      %p78 = scmp.ne.s32.totalorder %s70, %s73
      %p79 = scmp.eq.s32.totalorder %s20, 0
      %p80 = por %p78, %p79
      %p81 = scmp.ne.s32.totalorder %s70, %s73
      %p82 = scmp.eq.s32.totalorder %s25, 3
      %p83 = por %p81, %p82
      %p84 = scmp.ne.s32.totalorder %s73, %s74
      %p85 = scmp.eq.s32.totalorder %s25, 0
      %p86 = por %p84, %p85
      %p87 = scmp.ne.s32.totalorder %s73, %s74
      %p88 = scmp.eq.s32.totalorder %s26, 3
      %p89 = por %p87, %p88
      %p91 = scmp.ne.s32.totalorder %s74, %s90
      %p92 = scmp.eq.s32.totalorder %s26, 0
      %p93 = por %p91, %p92
      %s95 = sadd.s32 %s94, 1
      %p98 = scmp.eq.s32.totalorder %s20, 3
      %p99 = scmp.ne.s32.totalorder %s94, %s96
      %p100 = scmp.eq.s32.totalorder %s20, 0
      %p101 = por %p99, %p100
      %p102 = scmp.ne.s32.totalorder %s94, %s96
      %p103 = scmp.eq.s32.totalorder %s25, 3
      %p104 = por %p102, %p103
      %p105 = scmp.ne.s32.totalorder %s96, %s97
      %p106 = scmp.eq.s32.totalorder %s25, 0
      %p107 = por %p105, %p106
      %p108 = scmp.ne.s32.totalorder %s96, %s97
      %p109 = scmp.eq.s32.totalorder %s26, 3
      %p110 = por %p108, %p109
      %p112 = scmp.ne.s32.totalorder %s97, %s111
      %p113 = scmp.eq.s32.totalorder %s26, 0
      %p114 = por %p112, %p113
      %s116 = sadd.s32 %s115, 1
      %p119 = scmp.eq.s32.totalorder %s20, 3
      %p120 = scmp.ne.s32.totalorder %s115, %s117
      %p121 = scmp.eq.s32.totalorder %s20, 0
      %p122 = por %p120, %p121
      %p123 = scmp.ne.s32.totalorder %s115, %s117
      %p124 = scmp.eq.s32.totalorder %s25, 3
      %p125 = por %p123, %p124
      %p126 = scmp.ne.s32.totalorder %s117, %s118
      %p127 = scmp.eq.s32.totalorder %s25, 0
      %p128 = por %p126, %p127
      %p129 = scmp.ne.s32.totalorder %s117, %s118
      %p130 = scmp.eq.s32.totalorder %s26, 3
      %p131 = por %p129, %p130
      %p133 = scmp.ne.s32.totalorder %s118, %s132
      %p134 = scmp.eq.s32.totalorder %s26, 0
      %p135 = por %p133, %p134
      %s137 = sadd.s32 %s136, 1
      %p140 = scmp.eq.s32.totalorder %s20, 3
      %p141 = scmp.ne.s32.totalorder %s136, %s138
      %p142 = scmp.eq.s32.totalorder %s20, 0
      %p143 = por %p141, %p142
      %p144 = scmp.ne.s32.totalorder %s136, %s138
      %p145 = scmp.eq.s32.totalorder %s25, 3
      %p146 = por %p144, %p145
      %p147 = scmp.ne.s32.totalorder %s138, %s139
      %p148 = scmp.eq.s32.totalorder %s25, 0
      %p149 = por %p147, %p148
      %p150 = scmp.ne.s32.totalorder %s138, %s139
      %p151 = scmp.eq.s32.totalorder %s26, 3
      %p152 = por %p150, %p151
      %p154 = scmp.ne.s32.totalorder %s139, %s153
      %p155 = scmp.eq.s32.totalorder %s26, 0
      %p156 = por %p154, %p155
      %s157 = ssub.s32 %s27, %s39
      %s158 = ssub.s32 %s28, %s35
      %s159 = sor.u32 %s157, %s158
      %p160 = scmp.eq.s32.totalorder %s159, 0
      %s162 = sadd.s32 %s161, 1
      %s163 = scalar_select %p160, %s161, %s162
      %p166 = pneg %p160
      %p167 = scmp.eq.s32.totalorder %s20, 3
      %p168 = por %p166, %p167
      %p169 = scmp.ne.s32.totalorder %s161, %s164
      %p170 = scmp.eq.s32.totalorder %s20, 0
      %p171 = por %p169, %p170
      %p172 = scmp.ne.s32.totalorder %s161, %s164
      %p173 = scmp.eq.s32.totalorder %s25, 3
      %p174 = por %p172, %p173
      %p175 = scmp.ne.s32.totalorder %s164, %s165
      %p176 = scmp.eq.s32.totalorder %s25, 0
      %p177 = por %p175, %p176
      %p178 = scmp.ne.s32.totalorder %s164, %s165
      %p179 = scmp.eq.s32.totalorder %s26, 3
      %p180 = por %p178, %p179
      %p182 = scmp.ne.s32.totalorder %s165, %s181
      %p183 = scmp.eq.s32.totalorder %s26, 0
      %p184 = por %p182, %p183
      %p185 = scmp.le.s32.totalorder 1, %s20
      %p186 = scmp.lt.s32.totalorder %s20, 5
      %p187 = pnand %p185, %p186
      %p188 = pneg %p187
      // Predicated region
      $region9: #{tpu_custom_call.1} parent=5 // pred_check
        _
      $region10: #{tpu_custom_call.1} parent=5 // pred_check_branch
        %190 = sbr.rel (%p187) target = $region12
      $region11: #{tpu_custom_call.1} parent=5 // pred_region
        %s191 = ssub.s32 %s20, 1
        // Predicated region
        $region13: #{tpu_custom_call.1} parent=11 // pred_check
          %p192 = pneg %p107
        $region14: #{tpu_custom_call.1} parent=11 // pred_check_branch
          %194 = sbr.rel (%p192) target = $region16
        $region15: #{tpu_custom_call.1} parent=11 // pred_region
          _
        $region16: #{tpu_custom_call.1} parent=11 // pred_fallthru
          _
        // Predicated region
        $region17: #{tpu_custom_call.1} parent=11 // pred_check
          %p195 = pneg %p128
        $region18: #{tpu_custom_call.1} parent=11 // pred_check_branch
          %197 = sbr.rel (%p195) target = $region20
        $region19: #{tpu_custom_call.1} parent=11 // pred_region
          _
        $region20: #{tpu_custom_call.1} parent=11 // pred_fallthru
          _
        // Predicated region
        $region21: #{tpu_custom_call.1} parent=11 // pred_check
          %p198 = pneg %p149
        $region22: #{tpu_custom_call.1} parent=11 // pred_check_branch
          %200 = sbr.rel (%p198) target = $region24
        $region23: #{tpu_custom_call.1} parent=11 // pred_region
          _
        $region24: #{tpu_custom_call.1} parent=11 // pred_fallthru
          _
      $region12: #{tpu_custom_call.1} parent=5 // pred_fallthru
        _
      %p201 = scmp.lt.s32.totalorder %s20, 4
      // Predicated region
      $region25: #{tpu_custom_call.1} parent=5 // pred_check
        %p202 = pneg %p201
      $region26: #{tpu_custom_call.1} parent=5 // pred_check_branch
        %204 = sbr.rel (%p202) target = $region28
      $region27: #{tpu_custom_call.1} parent=5 // pred_region
        // Predicated region
        $region29: #{tpu_custom_call.1} parent=27 // pred_check
          %p205 = pneg %p54
        $region30: #{tpu_custom_call.1} parent=27 // pred_check_branch
          %207 = sbr.rel (%p205) target = $region32
        $region31: #{tpu_custom_call.1} parent=27 // pred_region
          %s208 = sand.u32 %s44, 1
          %s209 = scalar_lea.sflag [#allocation5], %s208
          %s210 = sand.u32 %s44, 1
          %s211 = smul.addr %s210, 32
          %s212 = scalar_lea.vmem [#allocation4], %s211
          %s214 = ssub.s32 512, 512
          %215 = vsyncadd %s209, %s214
          %s216 = smul.addr %s27, 8
          %s217 = sadd.s32 %s28, %s216
          %s218 = smul.addr %s217, 128
          %s219 = scalar_lea.hbm %s0, %s218
          %s220 = sshll.u32 %s212, 4
          %s221 = int_to_ptr.vmem [resolvable:$true] %s220
          %226 = dma.hbm_to_vmem [thread:$0]  %s219, 512, %s221, %s209, 256, 128, 8
        $region32: #{tpu_custom_call.1} parent=27 // pred_fallthru
          _
        // Predicated region
        $region33: #{tpu_custom_call.1} parent=27 // pred_check
          %p227 = pneg %p80
        $region34: #{tpu_custom_call.1} parent=27 // pred_check_branch
          %229 = sbr.rel (%p227) target = $region36
        $region35: #{tpu_custom_call.1} parent=27 // pred_region
          %s230 = sand.u32 %s70, 1
          %s231 = scalar_lea.sflag [#allocation8], %s230
          %s232 = sand.u32 %s70, 1
          %s233 = smul.addr %s232, 64
          %s234 = scalar_lea.vmem [#allocation7], %s233
          %s236 = ssub.s32 1024, 1024
          %237 = vsyncadd %s231, %s236
          %s238 = smul.addr %s27, 16
          %s239 = smul.addr %s238, 64
          %s240 = scalar_lea.hbm %s1, %s239
          %s241 = sshll.u32 %s234, 4
          %s242 = int_to_ptr.vmem [resolvable:$true] %s241
          %247 = dma.hbm_to_vmem [thread:$0]  %s240, 1024, %s242, %s231, 64, 64, 4
        $region36: #{tpu_custom_call.1} parent=27 // pred_fallthru
          _
      $region28: #{tpu_custom_call.1} parent=5 // pred_fallthru
        _
      %p248 = scmp.le.s32.totalorder 1, %s20
      %p249 = scmp.lt.s32.totalorder %s20, 5
      %p250 = pnand %p248, %p249
      %p251 = pneg %p250
      // Predicated region
      $region37: #{tpu_custom_call.1} parent=5 // pred_check
        _
      $region38: #{tpu_custom_call.1} parent=5 // pred_check_branch
        %253 = sbr.rel (%p250) target = $region40
      $region39: #{tpu_custom_call.1} parent=5 // pred_region
        %s254 = ssub.s32 %s20, 1
        %s255 = sand.u32 %s47, 1
        %s256 = scalar_lea.sflag [#allocation5], %s255
        %s257 = sand.u32 %s47, 1
        %s258 = smul.addr %s257, 32
        %s259 = scalar_lea.vmem [#allocation4], %s258
        // Predicated region
        $region41: #{tpu_custom_call.1} parent=39 // pred_check
          %p260 = pneg %p60
        $region42: #{tpu_custom_call.1} parent=39 // pred_check_branch
          %262 = sbr.rel (%p260) target = $region44
        $region43: #{tpu_custom_call.1} parent=39 // pred_region
          %263 = dma.done %s256, 512
        $region44: #{tpu_custom_call.1} parent=39 // pred_fallthru
          _
        %s264 = sand.u32 %s73, 1
        %s265 = scalar_lea.sflag [#allocation8], %s264
        %s266 = sand.u32 %s73, 1
        %s267 = smul.addr %s266, 64
        %s268 = scalar_lea.vmem [#allocation7], %s267
        // Predicated region
        $region45: #{tpu_custom_call.1} parent=39 // pred_check
          %p269 = pneg %p86
        $region46: #{tpu_custom_call.1} parent=39 // pred_check_branch
          %271 = sbr.rel (%p269) target = $region48
        $region47: #{tpu_custom_call.1} parent=39 // pred_region
          %272 = dma.done %s265, 1024
        $region48: #{tpu_custom_call.1} parent=39 // pred_fallthru
          _
        %s273 = sand.u32 %s47, 1
        %s274 = scalar_lea.sflag [#allocation5], %s273
        %s275 = sand.u32 %s47, 1
        %s276 = smul.addr %s275, 32
        %s277 = scalar_lea.vmem [#allocation4], %s276
        %p278 = pneg %p60
        %p279 = pneg %p57
        %s280 = sand.u32 %s73, 1
        %s281 = scalar_lea.sflag [#allocation8], %s280
        %s282 = sand.u32 %s73, 1
        %s283 = smul.addr %s282, 64
        %s284 = scalar_lea.vmem [#allocation7], %s283
        %p285 = pneg %p86
        %p286 = pneg %p83
        %p287 = pneg %p107
        %p288 = pneg %p104
        %p289 = pneg %p128
        %p290 = pneg %p125
        %p291 = pneg %p149
        %p292 = pneg %p146
        %p293 = pneg %p177
        %p294 = pneg %p174
        %s295 = sand.u32 %s164, 1
        %s296 = scalar_lea.sflag [#allocation6], %s295
        %s297 = sand.u32 %s164, 1
        %s298 = smul.addr %s297, 32
        %s299 = scalar_lea.vmem [#allocation9], %s298
        %p301 = scmp.eq.s32.totalorder %s30, 0
        // Predicated region
        $region49: #{tpu_custom_call.1} parent=39 // pred_check
          %p302 = pneg %p301
        $region50: #{tpu_custom_call.1} parent=39 // pred_check_branch
          %304 = sbr.rel (%p302) target = $region52
        $region51: #{tpu_custom_call.1} parent=39 // pred_region
          %v305 = vld [vmem:[%s3] sm:$0xf]
          %v306 = vld [vmem:[%s3 + $0x4] sm:$0xf]
          %v307 = vld [vmem:[%s3 + $0x8] sm:$0xf]
          %v308 = vld [vmem:[%s3 + $0xc] sm:$0xf]
          %v309 = vld [vmem:[%s268] sm:$0xf]
          %v310 = vld [vmem:[%s268 + $0x4] sm:$0xf]
          %v311 = vld [vmem:[%s268 + $0x8] sm:$0xf]
          %v312 = vld [vmem:[%s268 + $0xc] sm:$0xf]
          %v317 = vunpack.c.l.b16 %v305
          %v318 = vunpack.c.l.b16 %v306
          %v319 = vunpack.c.l.b16 %v307
          %v320 = vunpack.c.l.b16 %v308
          %v321 = vpack.c.b16 %v318, %v317
          %v322 = vpack.c.b16 %v320, %v319
          %v327 = vunpack.c.l.b16 %v309
          %v328 = vunpack.c.l.b16 %v310
          %v329 = vunpack.c.l.b16 %v311
          %v330 = vunpack.c.l.b16 %v312
          %v331 = vpack.c.b16 %v328, %v327
          %v332 = vpack.c.b16 %v330, %v329
          %vm335 = vcmask 261120
          %v337 = vsel %vm335, %v321, 0
          %v340 = vsel %vm335, %v322, 0
          %342 = vmatprep.subr.bf16.mxu0 0
          %343 = vmatpush1.bf16.msra.mxu0 0
          %344 = vmatprep.subr.bf16.mxu0 0
          %345 = vmatpush1.bf16.msra.mxu0 0
          %346 = vmatprep.subr.bf16.mxu0 0
          %347 = vmatpush1.bf16.msra.mxu0 0
          %348 = vmatprep.subr.bf16.mxu0 0
          %349 = vmatpush1.bf16.msra.mxu0 0
          %350 = vmatprep.subr.bf16.mxu0 0
          %351 = vmatpush1.bf16.msra.mxu0 0
          %352 = vmatprep.subr.bf16.mxu0 0
          %353 = vmatpush1.bf16.msra.mxu0 0
          %354 = vmatprep.subr.bf16.mxu0 0
          %355 = vmatpush1.bf16.msra.mxu0 %v332
          %356 = vmatprep.subr.bf16.mxu0 0
          %357 = vmatpush1.bf16.msra.mxu0 %v331
          %358 = vmatprep.subr.bf16.mxu0 0
          %359 = vmatpush2.bf16.msra.mxu0 0
          %360 = vmatprep.subr.bf16.mxu0 0
          %361 = vmatpush2.bf16.msra.mxu0 0
          %362 = vmatprep.subr.bf16.mxu0 0
          %363 = vmatpush2.bf16.msra.mxu0 0
          %364 = vmatprep.subr.bf16.mxu0 0
          %365 = vmatpush2.bf16.msra.mxu0 0
          %366 = vmatprep.subr.bf16.mxu0 0
          %367 = vmatpush2.bf16.msra.mxu0 0
          %368 = vmatprep.subr.bf16.mxu0 0
          %369 = vmatpush2.bf16.msra.mxu0 0
          %370 = vmatprep.subr.bf16.mxu0 0
          %371 = vmatpush2.bf16.msra.mxu0 0
          %372 = vmatprep.subr.bf16.mxu0 0
          %373 = vmatpush2.bf16.msra.mxu0 0
          %374 = vmatprep.mubr.bf16.mxu0 0
          %375 = vmatmul.mubr.bf16.gmra.mxu0 %v337
          %v376 = vpop.f32.mrf.mxu0
          %v377 = vadd.f32 0.0, %v376
          %v378 = vpop.f32.mrf.mxu0
          %v379 = vpop.f32.mrf.mxu0
          %v380 = vadd.f32 0.0, %v379
          %v381 = vpop.f32.mrf.mxu0
          %382 = vmatprep.mubr.bf16.mxu0 0
          %383 = vmatmul.mubr.bf16.gmra.mxu0 %v340
          %v384 = vpop.f32.mrf.mxu0
          %v385 = vadd.f32 0.0, %v384
          %v386 = vpop.f32.mrf.mxu0
          %v387 = vpop.f32.mrf.mxu0
          %v388 = vadd.f32 0.0, %v387
          %v389 = vpop.f32.mrf.mxu0
          %390 = vdwg.mxu0
          %s391 = scalar_lea.vmem %s268, 16 [#allocation7]
          %v392 = vld [vmem:[%s391] sm:$0xf]
          %v393 = vld [vmem:[%s391 + $0x4] sm:$0xf]
          %v394 = vld [vmem:[%s391 + $0x8] sm:$0xf]
          %v395 = vld [vmem:[%s391 + $0xc] sm:$0xf]
          %v400 = vunpack.c.l.b16 %v392
          %v401 = vunpack.c.l.b16 %v393
          %v402 = vunpack.c.l.b16 %v394
          %v403 = vunpack.c.l.b16 %v395
          %v404 = vpack.c.b16 %v401, %v400
          %v405 = vpack.c.b16 %v403, %v402
          %408 = vmatprep.subr.bf16.mxu0 0
          %409 = vmatpush1.bf16.msra.mxu0 0
          %410 = vmatprep.subr.bf16.mxu0 0
          %411 = vmatpush1.bf16.msra.mxu0 0
          %412 = vmatprep.subr.bf16.mxu0 0
          %413 = vmatpush1.bf16.msra.mxu0 0
          %414 = vmatprep.subr.bf16.mxu0 0
          %415 = vmatpush1.bf16.msra.mxu0 0
          %416 = vmatprep.subr.bf16.mxu0 0
          %417 = vmatpush1.bf16.msra.mxu0 0
          %418 = vmatprep.subr.bf16.mxu0 0
          %419 = vmatpush1.bf16.msra.mxu0 0
          %420 = vmatprep.subr.bf16.mxu0 0
          %421 = vmatpush1.bf16.msra.mxu0 %v405
          %422 = vmatprep.subr.bf16.mxu0 0
          %423 = vmatpush1.bf16.msra.mxu0 %v404
          %424 = vmatprep.subr.bf16.mxu0 0
          %425 = vmatpush2.bf16.msra.mxu0 0
          %426 = vmatprep.subr.bf16.mxu0 0
          %427 = vmatpush2.bf16.msra.mxu0 0
          %428 = vmatprep.subr.bf16.mxu0 0
          %429 = vmatpush2.bf16.msra.mxu0 0
          %430 = vmatprep.subr.bf16.mxu0 0
          %431 = vmatpush2.bf16.msra.mxu0 0
          %432 = vmatprep.subr.bf16.mxu0 0
          %433 = vmatpush2.bf16.msra.mxu0 0
          %434 = vmatprep.subr.bf16.mxu0 0
          %435 = vmatpush2.bf16.msra.mxu0 0
          %436 = vmatprep.subr.bf16.mxu0 0
          %437 = vmatpush2.bf16.msra.mxu0 0
          %438 = vmatprep.subr.bf16.mxu0 0
          %439 = vmatpush2.bf16.msra.mxu0 0
          %440 = vmatprep.mubr.bf16.mxu0 0
          %441 = vmatmul.mubr.bf16.gmra.mxu0 %v337
          %v442 = vpop.f32.mrf.mxu0
          %v443 = vadd.f32 0.0, %v442
          %v444 = vpop.f32.mrf.mxu0
          %v445 = vpop.f32.mrf.mxu0
          %v446 = vadd.f32 0.0, %v445
          %v447 = vpop.f32.mrf.mxu0
          %448 = vmatprep.mubr.bf16.mxu0 0
          %449 = vmatmul.mubr.bf16.gmra.mxu0 %v340
          %v450 = vpop.f32.mrf.mxu0
          %v451 = vadd.f32 0.0, %v450
          %v452 = vpop.f32.mrf.mxu0
          %v453 = vpop.f32.mrf.mxu0
          %v454 = vadd.f32 0.0, %v453
          %v455 = vpop.f32.mrf.mxu0
          %456 = vdwg.mxu0
          %v457 = vmax.f32 %v377, %v443
          %v458 = vmax.f32 %v380, %v446
          %v459 = vmax.f32 %v385, %v451
          %v460 = vmax.f32 %v388, %v454
          %s461 = scalar_lea.vmem %s268, 32 [#allocation7]
          %v462 = vld [vmem:[%s461] sm:$0xf]
          %v463 = vld [vmem:[%s461 + $0x4] sm:$0xf]
          %v464 = vld [vmem:[%s461 + $0x8] sm:$0xf]
          %v465 = vld [vmem:[%s461 + $0xc] sm:$0xf]
          %v470 = vunpack.c.l.b16 %v462
          %v471 = vunpack.c.l.b16 %v463
          %v472 = vunpack.c.l.b16 %v464
          %v473 = vunpack.c.l.b16 %v465
          %v474 = vpack.c.b16 %v471, %v470
          %v475 = vpack.c.b16 %v473, %v472
          %478 = vmatprep.subr.bf16.mxu0 0
          %479 = vmatpush1.bf16.msra.mxu0 0
          %480 = vmatprep.subr.bf16.mxu0 0
          %481 = vmatpush1.bf16.msra.mxu0 0
          %482 = vmatprep.subr.bf16.mxu0 0
          %483 = vmatpush1.bf16.msra.mxu0 0
          %484 = vmatprep.subr.bf16.mxu0 0
          %485 = vmatpush1.bf16.msra.mxu0 0
          %486 = vmatprep.subr.bf16.mxu0 0
          %487 = vmatpush1.bf16.msra.mxu0 0
          %488 = vmatprep.subr.bf16.mxu0 0
          %489 = vmatpush1.bf16.msra.mxu0 0
          %490 = vmatprep.subr.bf16.mxu0 0
          %491 = vmatpush1.bf16.msra.mxu0 %v475
          %492 = vmatprep.subr.bf16.mxu0 0
          %493 = vmatpush1.bf16.msra.mxu0 %v474
          %494 = vmatprep.subr.bf16.mxu0 0
          %495 = vmatpush2.bf16.msra.mxu0 0
          %496 = vmatprep.subr.bf16.mxu0 0
          %497 = vmatpush2.bf16.msra.mxu0 0
          %498 = vmatprep.subr.bf16.mxu0 0
          %499 = vmatpush2.bf16.msra.mxu0 0
          %500 = vmatprep.subr.bf16.mxu0 0
          %501 = vmatpush2.bf16.msra.mxu0 0
          %502 = vmatprep.subr.bf16.mxu0 0
          %503 = vmatpush2.bf16.msra.mxu0 0
          %504 = vmatprep.subr.bf16.mxu0 0
          %505 = vmatpush2.bf16.msra.mxu0 0
          %506 = vmatprep.subr.bf16.mxu0 0
          %507 = vmatpush2.bf16.msra.mxu0 0
          %508 = vmatprep.subr.bf16.mxu0 0
          %509 = vmatpush2.bf16.msra.mxu0 0
          %510 = vmatprep.mubr.bf16.mxu0 0
          %511 = vmatmul.mubr.bf16.gmra.mxu0 %v337
          %v512 = vpop.f32.mrf.mxu0
          %v513 = vadd.f32 0.0, %v512
          %v514 = vpop.f32.mrf.mxu0
          %v515 = vpop.f32.mrf.mxu0
          %v516 = vadd.f32 0.0, %v515
          %v517 = vpop.f32.mrf.mxu0
          %518 = vmatprep.mubr.bf16.mxu0 0
          %519 = vmatmul.mubr.bf16.gmra.mxu0 %v340
          %v520 = vpop.f32.mrf.mxu0
          %v521 = vadd.f32 0.0, %v520
          %v522 = vpop.f32.mrf.mxu0
          %v523 = vpop.f32.mrf.mxu0
          %v524 = vadd.f32 0.0, %v523
          %v525 = vpop.f32.mrf.mxu0
          %526 = vdwg.mxu0
          %v527 = vmax.f32 %v457, %v513
          %v528 = vmax.f32 %v458, %v516
          %v529 = vmax.f32 %v459, %v521
          %v530 = vmax.f32 %v460, %v524
          %s531 = scalar_lea.vmem %s268, 48 [#allocation7]
          %v532 = vld [vmem:[%s531] sm:$0xf]
          %v533 = vld [vmem:[%s531 + $0x4] sm:$0xf]
          %v534 = vld [vmem:[%s531 + $0x8] sm:$0xf]
          %v535 = vld [vmem:[%s531 + $0xc] sm:$0xf]
          %v540 = vunpack.c.l.b16 %v532
          %v541 = vunpack.c.l.b16 %v533
          %v542 = vunpack.c.l.b16 %v534
          %v543 = vunpack.c.l.b16 %v535
          %v544 = vpack.c.b16 %v541, %v540
          %v545 = vpack.c.b16 %v543, %v542
          %548 = vmatprep.subr.bf16.mxu0 0
          %549 = vmatpush1.bf16.msra.mxu0 0
          %550 = vmatprep.subr.bf16.mxu0 0
          %551 = vmatpush1.bf16.msra.mxu0 0
          %552 = vmatprep.subr.bf16.mxu0 0
          %553 = vmatpush1.bf16.msra.mxu0 0
          %554 = vmatprep.subr.bf16.mxu0 0
          %555 = vmatpush1.bf16.msra.mxu0 0
          %556 = vmatprep.subr.bf16.mxu0 0
          %557 = vmatpush1.bf16.msra.mxu0 0
          %558 = vmatprep.subr.bf16.mxu0 0
          %559 = vmatpush1.bf16.msra.mxu0 0
          %560 = vmatprep.subr.bf16.mxu0 0
          %561 = vmatpush1.bf16.msra.mxu0 %v545
          %562 = vmatprep.subr.bf16.mxu0 0
          %563 = vmatpush1.bf16.msra.mxu0 %v544
          %564 = vmatprep.subr.bf16.mxu0 0
          %565 = vmatpush2.bf16.msra.mxu0 0
          %566 = vmatprep.subr.bf16.mxu0 0
          %567 = vmatpush2.bf16.msra.mxu0 0
          %568 = vmatprep.subr.bf16.mxu0 0
          %569 = vmatpush2.bf16.msra.mxu0 0
          %570 = vmatprep.subr.bf16.mxu0 0
          %571 = vmatpush2.bf16.msra.mxu0 0
          %572 = vmatprep.subr.bf16.mxu0 0
          %573 = vmatpush2.bf16.msra.mxu0 0
          %574 = vmatprep.subr.bf16.mxu0 0
          %575 = vmatpush2.bf16.msra.mxu0 0
          %576 = vmatprep.subr.bf16.mxu0 0
          %577 = vmatpush2.bf16.msra.mxu0 0
          %578 = vmatprep.subr.bf16.mxu0 0
          %579 = vmatpush2.bf16.msra.mxu0 0
          %580 = vmatprep.mubr.bf16.mxu0 0
          %581 = vmatmul.mubr.bf16.gmra.mxu0 %v337
          %v582 = vpop.f32.mrf.mxu0
          %v583 = vadd.f32 0.0, %v582
          %v584 = vpop.f32.mrf.mxu0
          %v585 = vpop.f32.mrf.mxu0
          %v586 = vadd.f32 0.0, %v585
          %v587 = vpop.f32.mrf.mxu0
          %588 = vmatprep.mubr.bf16.mxu0 0
          %589 = vmatmul.mubr.bf16.gmra.mxu0 %v340
          %v590 = vpop.f32.mrf.mxu0
          %v591 = vadd.f32 0.0, %v590
          %v592 = vpop.f32.mrf.mxu0
          %v593 = vpop.f32.mrf.mxu0
          %v594 = vadd.f32 0.0, %v593
          %v595 = vpop.f32.mrf.mxu0
          %596 = vdwg.mxu0
          %v597 = vmax.f32 %v527, %v583
          %v598 = vmax.f32 %v528, %v586
          %v599 = vmax.f32 %v529, %v591
          %v600 = vmax.f32 %v530, %v594
          %v601 = vpack.c.bf16 %v598, %v597
          %v603 = vunpack.c.l.b16 %v601
          %v604 = vunpack.c.h.b16 %v601
          %v605 = vpack.c.b16 %v603, %v603
          %v606 = vpack.c.b16 %v604, %v604
          %vm609 = vcmask 519168
          %610 = vst.msk [vmem:[#allocation2] sm:$0xf] %vm609, %v605
          %611 = vst.msk [vmem:[#allocation2 + $0x4] sm:$0xf] %vm609, %v606
          %v612 = vpack.c.bf16 %v600, %v599
          %v614 = vunpack.c.l.b16 %v612
          %v615 = vunpack.c.h.b16 %v612
          %v616 = vpack.c.b16 %v614, %v614
          %v617 = vpack.c.b16 %v615, %v615
          %620 = vst.msk [vmem:[#allocation3] sm:$0xf] %vm609, %v616
          %621 = vst.msk [vmem:[#allocation3 + $0x4] sm:$0xf] %vm609, %v617
        $region52: #{tpu_custom_call.1} parent=39 // pred_fallthru
          _
        %v622 = vld [vmem:[%s259] sm:$0xff]
        %v623 = vld [vmem:[%s259 + $0x8] sm:$0xff]
        %v624 = vld [vmem:[%s259 + $0x10] sm:$0xff]
        %v625 = vld [vmem:[%s259 + $0x18] sm:$0xff]
        %v626 = vld [vmem:[%s2] sm:$0xf]
        %v627 = vld [vmem:[%s2 + $0x4] sm:$0xf]
        %v628 = vpack.c.bf16 %v623, %v622
        %v629 = vpack.c.bf16 %v625, %v624
        %v632 = vunpack.c.l.b16 %v626
        %v633 = vunpack.c.l.b16 %v627
        %v634 = vpack.c.b16 %v633, %v632
        %vm635 = vcmask 261120
        %v637 = vsel %vm635, %v634, 0
        %639 = vmatprep.subr.bf16.mxu0 0
        %640 = vmatpush1.bf16.msra.mxu0 0
        %641 = vmatprep.subr.bf16.mxu0 0
        %642 = vmatpush1.bf16.msra.mxu0 0
        %643 = vmatprep.subr.bf16.mxu0 0
        %644 = vmatpush1.bf16.msra.mxu0 0
        %645 = vmatprep.subr.bf16.mxu0 0
        %646 = vmatpush1.bf16.msra.mxu0 0
        %647 = vmatprep.subr.bf16.mxu0 0
        %648 = vmatpush1.bf16.msra.mxu0 0
        %649 = vmatprep.subr.bf16.mxu0 0
        %650 = vmatpush1.bf16.msra.mxu0 0
        %651 = vmatprep.subr.bf16.mxu0 0
        %652 = vmatpush1.bf16.msra.mxu0 %v629
        %653 = vmatprep.subr.bf16.mxu0 0
        %654 = vmatpush1.bf16.msra.mxu0 %v628
        %655 = vmatprep.subr.bf16.mxu0 0
        %656 = vmatpush2.bf16.msra.mxu0 0
        %657 = vmatprep.subr.bf16.mxu0 0
        %658 = vmatpush2.bf16.msra.mxu0 0
        %659 = vmatprep.subr.bf16.mxu0 0
        %660 = vmatpush2.bf16.msra.mxu0 0
        %661 = vmatprep.subr.bf16.mxu0 0
        %662 = vmatpush2.bf16.msra.mxu0 0
        %663 = vmatprep.subr.bf16.mxu0 0
        %664 = vmatpush2.bf16.msra.mxu0 0
        %665 = vmatprep.subr.bf16.mxu0 0
        %666 = vmatpush2.bf16.msra.mxu0 0
        %667 = vmatprep.subr.bf16.mxu0 0
        %668 = vmatpush2.bf16.msra.mxu0 0
        %669 = vmatprep.subr.bf16.mxu0 0
        %670 = vmatpush2.bf16.msra.mxu0 0
        %671 = vmatprep.mubr.bf16.mxu0 0
        %672 = vmatmul.mubr.bf16.gmra.mxu0 %v637
        %v673 = vpop.f32.mrf.mxu0
        %v674 = vadd.f32 0.0, %v673
        %v675 = vpop.f32.mrf.mxu0
        %v676 = vpop.f32.mrf.mxu0
        %v677 = vadd.f32 0.0, %v676
        %v678 = vpop.f32.mrf.mxu0
        %679 = vdwg.mxu0
        %v680 = vpack.c.bf16 %v677, %v674
        %v681 = vld [vmem:[#allocation2] sm:$0xf]
        %v682 = vld [vmem:[#allocation2 + $0x4] sm:$0xf]
        %v685 = vunpack.c.l.b16 %v681
        %v686 = vunpack.c.l.b16 %v682
        %v687 = vpack.c.b16 %v686, %v685
        %689 = vxpose.xlu0.c.b16.start [1/8] %v687, 128
        %690 = vxpose.xlu0.c.b16.cont [2/8] 0, 128
        %691 = vxpose.xlu0.c.b16.cont [3/8] 0, 128
        %692 = vxpose.xlu0.c.b16.cont [4/8] 0, 128
        %693 = vxpose.xlu0.c.b16.cont [5/8] 0, 128
        %694 = vxpose.xlu0.c.b16.cont [6/8] 0, 128
        %695 = vxpose.xlu0.c.b16.cont [7/8] 0, 128
        %696 = vxpose.xlu0.c.b16.end [8/8] 0, 128
        %v697 = vpop.trf.xlu0
        %v698 = vpop.trf.xlu0
        %v699 = vpop.trf.xlu0
        %v700 = vpop.trf.xlu0
        %v701 = vpop.trf.xlu0
        %v702 = vpop.trf.xlu0
        %v703 = vpop.trf.xlu0
        %v704 = vpop.trf.xlu0
        %vm705 = vcmask 130048
        %v707 = vsel %vm705, %v697, 0
        %v710 = vsel %vm705, %v698, 0
        %v713 = vsel %vm705, %v699, 0
        %v716 = vsel %vm705, %v700, 0
        %718 = vmatprep.subr.bf16.mxu0 0
        %719 = vmatpush1.bf16.msra.mxu0 0
        %720 = vmatprep.subr.bf16.mxu0 0
        %721 = vmatpush1.bf16.msra.mxu0 0
        %722 = vmatprep.subr.bf16.mxu0 0
        %723 = vmatpush1.bf16.msra.mxu0 0
        %724 = vmatprep.subr.bf16.mxu0 0
        %725 = vmatpush1.bf16.msra.mxu0 0
        %726 = vmatprep.subr.bf16.mxu0 0
        %727 = vmatpush1.bf16.msra.mxu0 0
        %728 = vmatprep.subr.bf16.mxu0 0
        %729 = vmatpush1.bf16.msra.mxu0 0
        %730 = vmatprep.subr.bf16.mxu0 0
        %731 = vmatpush1.bf16.msra.mxu0 0
        %732 = vmatprep.subr.bf16.mxu0 0
        %733 = vmatpush1.bf16.msra.mxu0 %v680
        %734 = vmatprep.subr.bf16.mxu0 0
        %735 = vmatpush2.bf16.msra.mxu0 0
        %736 = vmatprep.subr.bf16.mxu0 0
        %737 = vmatpush2.bf16.msra.mxu0 0
        %738 = vmatprep.subr.bf16.mxu0 0
        %739 = vmatpush2.bf16.msra.mxu0 0
        %740 = vmatprep.subr.bf16.mxu0 0
        %741 = vmatpush2.bf16.msra.mxu0 0
        %742 = vmatprep.subr.bf16.mxu0 0
        %743 = vmatpush2.bf16.msra.mxu0 0
        %744 = vmatprep.subr.bf16.mxu0 0
        %745 = vmatpush2.bf16.msra.mxu0 0
        %746 = vmatprep.subr.bf16.mxu0 0
        %747 = vmatpush2.bf16.msra.mxu0 0
        %748 = vmatprep.subr.bf16.mxu0 0
        %749 = vmatpush2.bf16.msra.mxu0 0
        %750 = vmatprep.mubr.bf16.mxu0 0
        %751 = vmatmul.mubr.bf16.gmra.mxu0 %v707
        %v752 = vpop.f32.mrf.mxu0
        %v753 = vadd.f32 0.0, %v752
        %v754 = vpop.f32.mrf.mxu0
        %v755 = vpop.f32.mrf.mxu0
        %v756 = vadd.f32 0.0, %v755
        %v757 = vpop.f32.mrf.mxu0
        %758 = vmatprep.mubr.bf16.mxu0 0
        %759 = vmatmul.mubr.bf16.gmra.mxu0 %v710
        %v760 = vpop.f32.mrf.mxu0
        %v761 = vadd.f32 0.0, %v760
        %v762 = vpop.f32.mrf.mxu0
        %v763 = vpop.f32.mrf.mxu0
        %v764 = vadd.f32 0.0, %v763
        %v765 = vpop.f32.mrf.mxu0
        %766 = vmatprep.mubr.bf16.mxu0 0
        %767 = vmatmul.mubr.bf16.gmra.mxu0 %v713
        %v768 = vpop.f32.mrf.mxu0
        %v769 = vadd.f32 0.0, %v768
        %v770 = vpop.f32.mrf.mxu0
        %v771 = vpop.f32.mrf.mxu0
        %v772 = vadd.f32 0.0, %v771
        %v773 = vpop.f32.mrf.mxu0
        %774 = vmatprep.mubr.bf16.mxu0 0
        %775 = vmatmul.mubr.bf16.gmra.mxu0 %v716
        %v776 = vpop.f32.mrf.mxu0
        %v777 = vadd.f32 0.0, %v776
        %v778 = vpop.f32.mrf.mxu0
        %v779 = vpop.f32.mrf.mxu0
        %v780 = vadd.f32 0.0, %v779
        %v781 = vpop.f32.mrf.mxu0
        %782 = vdwg.mxu0
        %v783 = vmax.f32 %v753, %v769
        %v784 = vmax.f32 %v756, %v772
        %v785 = vmax.f32 %v761, %v777
        %v786 = vmax.f32 %v764, %v780
        %v787 = vmax.f32 %v783, %v784
        %v788 = vmax.f32 %v785, %v786
        %v789 = vmax.f32 %v787, %v788
        %v790 = vrot.slane %v789, 4
        %v791 = vmax.f32 %v789, %v790
        %v792 = vrot.slane %v791, 2
        %v793 = vmax.f32 %v791, %v792
        %v794 = vrot.slane %v793, 1
        %v795 = vmax.f32 %v793, %v794
        %v796 = vsub.f32 %v753, %v795
        %v797 = vsub.f32 %v756, %v795
        %v798 = vsub.f32 %v761, %v795
        %v799 = vsub.f32 %v764, %v795
        %v800 = vsub.f32 %v769, %v795
        %v801 = vsub.f32 %v772, %v795
        %v802 = vsub.f32 %v777, %v795
        %v803 = vsub.f32 %v780, %v795
        %v804 = vmul.f32 %v796, 1.442695
        %v805 = vpow.pop %v804
        %v806 = vmul.f32 %v797, 1.442695
        %v807 = vpow.pop %v806
        %v808 = vmul.f32 %v798, 1.442695
        %v809 = vpow.pop %v808
        %v810 = vmul.f32 %v799, 1.442695
        %v811 = vpow.pop %v810
        %v812 = vmul.f32 %v800, 1.442695
        %v813 = vpow.pop %v812
        %v814 = vmul.f32 %v801, 1.442695
        %v815 = vpow.pop %v814
        %v816 = vmul.f32 %v802, 1.442695
        %v817 = vpow.pop %v816
        %v818 = vmul.f32 %v803, 1.442695
        %v819 = vpow.pop %v818
        %v820 = vadd.f32 %v805, %v807
        %v821 = vadd.f32 %v820, %v809
        %v822 = vadd.f32 %v821, %v811
        %v823 = vadd.f32 %v822, %v813
        %v824 = vadd.f32 %v823, %v815
        %v825 = vadd.f32 %v824, %v817
        %v826 = vadd.f32 %v825, %v819
        %v827 = vrot.slane %v826, 4
        %v828 = vadd.f32 %v826, %v827
        %v829 = vrot.slane %v828, 2
        %v830 = vadd.f32 %v828, %v829
        %v831 = vrot.slane %v830, 1
        %v832 = vadd.f32 %v830, %v831
        %v833 = vpack.c.bf16 %v807, %v805
        %v834 = vpack.c.bf16 %v811, %v809
        %v835 = vpack.c.bf16 %v815, %v813
        %v836 = vpack.c.bf16 %v819, %v817
        %v837 = vld [vmem:[#allocation3] sm:$0xf]
        %v838 = vld [vmem:[#allocation3 + $0x4] sm:$0xf]
        %v841 = vunpack.c.l.b16 %v837
        %v842 = vunpack.c.l.b16 %v838
        %v843 = vpack.c.b16 %v842, %v841
        %vm844 = vcmask 523264
        %v846 = vsel %vm844, %v843, 0
        %848 = vmatprep.subr.bf16.mxu0 0
        %849 = vmatpush1.bf16.msra.mxu0 0
        %850 = vmatprep.subr.bf16.mxu0 0
        %851 = vmatpush1.bf16.msra.mxu0 0
        %852 = vmatprep.subr.bf16.mxu0 0
        %853 = vmatpush1.bf16.msra.mxu0 0
        %854 = vmatprep.subr.bf16.mxu0 0
        %855 = vmatpush1.bf16.msra.mxu0 0
        %856 = vmatprep.subr.bf16.mxu0 0
        %857 = vmatpush1.bf16.msra.mxu0 %v836
        %858 = vmatprep.subr.bf16.mxu0 0
        %859 = vmatpush1.bf16.msra.mxu0 %v835
        %860 = vmatprep.subr.bf16.mxu0 0
        %861 = vmatpush1.bf16.msra.mxu0 %v834
        %862 = vmatprep.subr.bf16.mxu0 0
        %863 = vmatpush1.bf16.msra.mxu0 %v833
        %864 = vmatprep.subr.bf16.mxu0 0
        %865 = vmatpush2.bf16.msra.mxu0 0
        %866 = vmatprep.subr.bf16.mxu0 0
        %867 = vmatpush2.bf16.msra.mxu0 0
        %868 = vmatprep.subr.bf16.mxu0 0
        %869 = vmatpush2.bf16.msra.mxu0 0
        %870 = vmatprep.subr.bf16.mxu0 0
        %871 = vmatpush2.bf16.msra.mxu0 0
        %872 = vmatprep.subr.bf16.mxu0 0
        %873 = vmatpush2.bf16.msra.mxu0 0
        %874 = vmatprep.subr.bf16.mxu0 0
        %875 = vmatpush2.bf16.msra.mxu0 0
        %876 = vmatprep.subr.bf16.mxu0 0
        %877 = vmatpush2.bf16.msra.mxu0 0
        %878 = vmatprep.subr.bf16.mxu0 0
        %879 = vmatpush2.bf16.msra.mxu0 0
        %880 = vmatprep.mubr.bf16.mxu0 0
        %881 = vmatmul.mubr.bf16.gmra.mxu0 %v846
        %v882 = vpop.f32.mrf.mxu0
        %v883 = vadd.f32 0.0, %v882
        %v884 = vpop.f32.mrf.mxu0
        %v885 = vpop.f32.mrf.mxu0
        %v886 = vadd.f32 0.0, %v885
        %v887 = vpop.f32.mrf.mxu0
        %888 = vdwg.mxu0
        %v889 = vld [vmem:[%s4] sm:$0xf]
        %v890 = vld [vmem:[%s4 + $0x4] sm:$0xf]
        %v891 = vld [vmem:[%s4 + $0x8] sm:$0xf]
        %v892 = vld [vmem:[%s4 + $0xc] sm:$0xf]
        %v893 = vpack.c.bf16 %v886, %v883
        %v898 = vunpack.c.l.b16 %v889
        %v899 = vunpack.c.l.b16 %v890
        %v900 = vunpack.c.l.b16 %v891
        %v901 = vunpack.c.l.b16 %v892
        %v902 = vpack.c.b16 %v899, %v898
        %v903 = vpack.c.b16 %v901, %v900
        %v905 = vsel %vm705, %v902, 0
        %v908 = vsel %vm705, %v903, 0
        %910 = vmatprep.subr.bf16.mxu0 0
        %911 = vmatpush1.bf16.msra.mxu0 0
        %912 = vmatprep.subr.bf16.mxu0 0
        %913 = vmatpush1.bf16.msra.mxu0 0
        %914 = vmatprep.subr.bf16.mxu0 0
        %915 = vmatpush1.bf16.msra.mxu0 0
        %916 = vmatprep.subr.bf16.mxu0 0
        %917 = vmatpush1.bf16.msra.mxu0 0
        %918 = vmatprep.subr.bf16.mxu0 0
        %919 = vmatpush1.bf16.msra.mxu0 0
        %920 = vmatprep.subr.bf16.mxu0 0
        %921 = vmatpush1.bf16.msra.mxu0 0
        %922 = vmatprep.subr.bf16.mxu0 0
        %923 = vmatpush1.bf16.msra.mxu0 0
        %924 = vmatprep.subr.bf16.mxu0 0
        %925 = vmatpush1.bf16.msra.mxu0 %v893
        %926 = vmatprep.subr.bf16.mxu0 0
        %927 = vmatpush2.bf16.msra.mxu0 0
        %928 = vmatprep.subr.bf16.mxu0 0
        %929 = vmatpush2.bf16.msra.mxu0 0
        %930 = vmatprep.subr.bf16.mxu0 0
        %931 = vmatpush2.bf16.msra.mxu0 0
        %932 = vmatprep.subr.bf16.mxu0 0
        %933 = vmatpush2.bf16.msra.mxu0 0
        %934 = vmatprep.subr.bf16.mxu0 0
        %935 = vmatpush2.bf16.msra.mxu0 0
        %936 = vmatprep.subr.bf16.mxu0 0
        %937 = vmatpush2.bf16.msra.mxu0 0
        %938 = vmatprep.subr.bf16.mxu0 0
        %939 = vmatpush2.bf16.msra.mxu0 0
        %940 = vmatprep.subr.bf16.mxu0 0
        %941 = vmatpush2.bf16.msra.mxu0 0
        %942 = vmatprep.mubr.bf16.mxu0 0
        %943 = vmatmul.mubr.bf16.gmra.mxu0 %v905
        %v944 = vpop.f32.mrf.mxu0
        %v945 = vadd.f32 0.0, %v944
        %v946 = vpop.f32.mrf.mxu0
        %v947 = vpop.f32.mrf.mxu0
        %v948 = vadd.f32 0.0, %v947
        %v949 = vpop.f32.mrf.mxu0
        %950 = vmatprep.mubr.bf16.mxu0 0
        %951 = vmatmul.mubr.bf16.gmra.mxu0 %v908
        %v952 = vpop.f32.mrf.mxu0
        %v953 = vadd.f32 0.0, %v952
        %v954 = vpop.f32.mrf.mxu0
        %v955 = vpop.f32.mrf.mxu0
        %v956 = vadd.f32 0.0, %v955
        %v957 = vpop.f32.mrf.mxu0
        %958 = vdwg.mxu0
        %v959 = vrcp.pop %v832
        %v960 = vmul.f32 %v945, %v959
        %v961 = vmul.f32 %v948, %v959
        %v962 = vmul.f32 %v953, %v959
        %v963 = vmul.f32 %v956, %v959
        %v964 = vadd.f32 %v622, %v960
        %v965 = vadd.f32 %v623, %v961
        %v966 = vadd.f32 %v624, %v962
        %v967 = vadd.f32 %v625, %v963
        %968 = vst [vmem:[%s299] sm:$0xff] %v964
        %969 = vst [vmem:[%s299 + $0x8] sm:$0xff] %v965
        %970 = vst [vmem:[%s299 + $0x10] sm:$0xff] %v966
        %971 = vst [vmem:[%s299 + $0x18] sm:$0xff] %v967
        %s972 = sand.u32 %s164, 1
        %s973 = scalar_lea.sflag [#allocation6], %s972
        %s974 = sand.u32 %s164, 1
        %s975 = smul.addr %s974, 32
        %s976 = scalar_lea.vmem [#allocation9], %s975
        // Predicated region
        $region53: #{tpu_custom_call.1} parent=39 // pred_check
          %p977 = pneg %p174
        $region54: #{tpu_custom_call.1} parent=39 // pred_check_branch
          %979 = sbr.rel (%p977) target = $region56
        $region55: #{tpu_custom_call.1} parent=39 // pred_region
          %s981 = ssub.s32 512, 512
          %982 = vsyncadd %s973, %s981
          %s983 = smul.addr %s29, 8
          %s984 = sadd.s32 %s30, %s983
          %s985 = smul.addr %s984, 128
          %s986 = scalar_lea.hbm %s5, %s985
          %s987 = sshll.u32 %s976, 4
          %s988 = int_to_ptr.vmem [resolvable:$true] %s987
          %993 = dma.vmem_to_hbm [thread:$0]  %s988, 512, %s986, %s973, 128, 256, 8
        $region56: #{tpu_custom_call.1} parent=39 // pred_fallthru
          _
      $region40: #{tpu_custom_call.1} parent=5 // pred_fallthru
        _
      %p994 = scmp.le.s32.totalorder 2, %s20
      // Predicated region
      $region57: #{tpu_custom_call.1} parent=5 // pred_check
        %p995 = pneg %p994
      $region58: #{tpu_custom_call.1} parent=5 // pred_check_branch
        %997 = sbr.rel (%p995) target = $region60
      $region59: #{tpu_custom_call.1} parent=5 // pred_region
        %s998 = ssub.s32 %s20, 2
        // Predicated region
        $region61: #{tpu_custom_call.1} parent=59 // pred_check
          %p999 = pneg %p180
        $region62: #{tpu_custom_call.1} parent=59 // pred_check_branch
          %1001 = sbr.rel (%p999) target = $region64
        $region63: #{tpu_custom_call.1} parent=59 // pred_region
          %s1002 = sand.u32 %s165, 1
          %s1003 = scalar_lea.sflag [#allocation6], %s1002
          %s1004 = sand.u32 %s165, 1
          %s1005 = smul.addr %s1004, 32
          %s1006 = scalar_lea.vmem [#allocation9], %s1005
          %1007 = dma.done %s1003, 512
        $region64: #{tpu_custom_call.1} parent=59 // pred_fallthru
          _
      $region60: #{tpu_custom_call.1} parent=5 // pred_fallthru
        _
    $region6: #{tpu_custom_call.1} parent=1 // loop_footer
      %s24 = sadd.s32 1, %s20
    $region7: #{tpu_custom_call.1} parent=1 // loop_footer_branch
      %19 = sbr.rel target = $region3
    $region8: #{tpu_custom_call.1} parent=1 // loop_exit
      _
    %1008 = vsyncpa [#allocation5], 1
    %s1009 = scalar_lea.sflag [#allocation5], 1
    %1010 = vsyncpa %s1009, 1
    %1011 = vsyncpa [#allocation8], 1
    %s1012 = scalar_lea.sflag [#allocation8], 1
    %1013 = vsyncpa %s1012, 1
    %1014 = vsyncpa [#allocation6], 1
    %s1015 = scalar_lea.sflag [#allocation6], 1
    %1016 = vsyncpa %s1015, 1

</llo_original>
